<compile_context>
chip_gen: v5e
topology: v5e:2x2
jax: 0.10.0
libtpu: 0.0.40
codegen_flags: <defaults>
</compile_context>

<pallas_src>
import functools

import jax
import jax.numpy as jnp
from jax.experimental import pallas as pl
from jax.experimental.pallas import tpu as pltpu


# ---------------------------------------------------------------------------
# Fused kernel: QKV projection + attention + output projection per batch tile
# ---------------------------------------------------------------------------
def _fused_attention_kernel(x_ref, wqkv_ref, wout_ref, o_ref, out_scr, *,
                            heads, dim_head):
    """Kernel refs:
         x_ref    : (B_TILE, n, dim)        f32
         wqkv_ref : (dim, 3*inner)          bf16  (scale pre-folded into q cols)
         wout_ref : (inner, dim)            bf16
         o_ref    : (B_TILE, n, dim)        f32
         out_scr  : (B_TILE, n, inner)      f32 VMEM scratch (merged heads)
    """
    b_tile, n, dim = x_ref.shape
    inner = heads * dim_head

    # ---- QKV projection: one big matmul with M = B_TILE * n ----------------
    x2 = x_ref[...].reshape(b_tile * n, dim).astype(jnp.bfloat16)
    qkv = jnp.dot(x2, wqkv_ref[...],
                  preferred_element_type=jnp.float32)          # (M, 3*inner) f32
    # Reshape in f32 (layout-clean: n == 8 sublanes), then cast matmul operands.
    qkv3 = qkv.reshape(b_tile, n, 3 * inner).astype(jnp.bfloat16)

    # ---- Per-head attention (static unrolled loop, batched over B_TILE) ----
    for h in range(heads):
        lo = h * dim_head
        q_h = qkv3[:, :, lo:lo + dim_head]                     # (B, n, d) bf16
        k_h = qkv3[:, :, inner + lo:inner + lo + dim_head]     # (B, n, d) bf16
        v_h = qkv3[:, :, 2 * inner + lo:2 * inner + lo + dim_head]

        # q @ k^T (scale already folded into the q weight columns).
        dots = jnp.einsum('bqd,bkd->bqk', q_h, k_h,
                          preferred_element_type=jnp.float32)  # (B, n, n) f32

        # Numerically stable softmax, all in f32, exact normalization.
        dots = dots - jnp.max(dots, axis=-1, keepdims=True)
        e = jnp.exp(dots)
        attn = e / jnp.sum(e, axis=-1, keepdims=True)          # (B, n, n) f32

        out_h = jnp.einsum('bqk,bkd->bqd', attn.astype(jnp.bfloat16), v_h,
                           preferred_element_type=jnp.float32)  # (B, n, d) f32

        # Merge heads by writing at the head's static lane offset.
        out_scr[:, :, lo:lo + dim_head] = out_h

    # ---- Single output projection over the merged (inner) axis -------------
    merged = out_scr[...].reshape(b_tile * n, inner).astype(jnp.bfloat16)
    out = jnp.dot(merged, wout_ref[...],
                  preferred_element_type=jnp.float32)          # (M, dim) f32
    o_ref[...] = out.reshape(b_tile, n, dim).astype(o_ref.dtype)


# ---------------------------------------------------------------------------
# Wrapper
# ---------------------------------------------------------------------------
def _pick_batch_tile(b, max_tile=8):
    """Largest divisor of b (<= max_tile) that keeps the grid length >= 2 when
    possible, so v7x can shard the 'parallel' batch axis across both TCs."""
    divs = [t for t in range(1, min(b, max_tile) + 1) if b % t == 0]
    multi = [t for t in divs if b // t >= 2]
    return max(multi) if multi else max(divs)


def attention_forward(x, w_qkv, w_out, *, heads, dim_head, mask=None,
                      batch_tile=None):
    """Pallas equivalent of Attention.forward(x, mask=None).

    x:     (b, n, dim)                   float32
    w_qkv: (dim, 3 * heads * dim_head)   pre-transposed nn.Linear weight (no bias)
    w_out: (heads * dim_head, dim)       pre-transposed nn.Linear weight
    """
    if mask is not None:
        # TODO(synk): boolean mask path (F.pad + masked_fill) not implemented.
        raise NotImplementedError("mask is not supported by this Pallas kernel")

    b, n, dim = x.shape
    inner = heads * dim_head
    assert w_qkv.shape == (dim, 3 * inner)
    assert w_out.shape == (inner, dim)

    # Module uses dim**-0.5 (not dim_head**-0.5); fold it into the q columns of
    # the qkv weight once, so the kernel never scales the (n, n) dots block.
    scale = dim ** (-0.5)
    w_qkv_folded = w_qkv.at[:, :inner].multiply(scale)

    # bf16 weights: MXU-native, half the DMA/VMEM footprint.
    w_qkv_bf = w_qkv_folded.astype(jnp.bfloat16)
    w_out_bf = w_out.astype(jnp.bfloat16)

    b_tile = batch_tile if batch_tile is not None else _pick_batch_tile(b)
    assert b % b_tile == 0, "batch must be divisible by the batch tile"
    grid = (b // b_tile,)

    kernel = functools.partial(_fused_attention_kernel,
                               heads=heads, dim_head=dim_head)

    # Advisory cost estimate for the XLA scheduler.
    flops = (2 * b * n * dim * (3 * inner)            # qkv projection
             + 2 * b * heads * n * n * dim_head * 2   # q·k^T and attn·v
             + 2 * b * n * inner * dim)               # output projection
    transcendentals = b * heads * n * n               # exp in softmax
    bytes_accessed = (x.size * 4 + w_qkv_bf.size * 2 + w_out_bf.size * 2
                      + b * n * dim * 4)

    # Scoped-VMEM budget: 2x-buffered tiles + weights + scratch + headroom,
    # clamped to [32 MiB, 64 MiB] (v7x physical VMEM is 64 MiB).
    tile_bytes = b_tile * n * dim * 4 * 2                       # x tile + out tile
    w_bytes = (dim * 3 * inner + inner * dim) * 2
    scratch_bytes = b_tile * n * inner * 4
    temp_bytes = b_tile * n * (3 * inner) * 4 + 4 * b_tile * n * n * 4
    needed = 2 * (tile_bytes + w_bytes) + scratch_bytes + temp_bytes
    vmem_limit = int(min(64 * 2 ** 20, max(32 * 2 ** 20, 4 * needed)))

    return pl.pallas_call(
        kernel,
        out_shape=jax.ShapeDtypeStruct((b, n, dim), x.dtype),
        grid=grid,
        in_specs=[
            # B_TILE batch elements per grid step.
            pl.BlockSpec((b_tile, n, dim), lambda i: (i, 0, 0)),
            # Weights: full arrays, same block every step (stay VMEM-resident).
            pl.BlockSpec((dim, 3 * inner), lambda i: (0, 0)),
            pl.BlockSpec((inner, dim), lambda i: (0, 0)),
        ],
        out_specs=pl.BlockSpec((b_tile, n, dim), lambda i: (i, 0, 0)),
        scratch_shapes=[pltpu.VMEM((b_tile, n, inner), jnp.float32)],
        compiler_params=pltpu.CompilerParams(
            dimension_semantics=("parallel",),   # batch axis is independent
            vmem_limit_bytes=vmem_limit,
        ),
        cost_estimate=pl.CostEstimate(
            flops=flops,
            transcendentals=transcendentals,
            bytes_accessed=bytes_accessed,
        ),
    )(x, w_qkv_bf, w_out_bf)


def _reference_forward(x, w_qkv, w_out, *, heads, dim_head):
    """Pure-JAX f32 reference mirroring the PyTorch forward (mask=None)."""
    b, n, dim = x.shape
    inner = heads * dim_head
    scale = dim ** (-0.5)
    qkv = x @ w_qkv
    qkv = qkv.reshape(b, n, 3, heads, dim_head)
    q = jnp.transpose(qkv[:, :, 0], (0, 2, 1, 3))
    k = jnp.transpose(qkv[:, :, 1], (0, 2, 1, 3))
    v = jnp.transpose(qkv[:, :, 2], (0, 2, 1, 3))
    dots = jnp.einsum("bhid,bhjd->bhij", q, k) * scale
    attn = jax.nn.softmax(dots, axis=-1)
    out = jnp.einsum("bhij,bhjd->bhid", attn, v)
    out = jnp.transpose(out, (0, 2, 1, 3)).reshape(b, n, inner)
    return out @ w_out


# ---------------------------------------------------------------------------
# Main
# ---------------------------------------------------------------------------
if __name__ == "__main__":
    # Small shapes consistent with the module: dim=32, heads=4, dim_head=8.
    # batch=4 -> B_TILE=2, grid=2: exercises both batch tiling and the
    # parallel (megacore-shardable) grid axis.
    batch, seq, dim = 4, 8, 32
    heads, dim_head = 4, 8
    inner = heads * dim_head

    key = jax.random.PRNGKey(0)
    kx, kqkv, kout = jax.random.split(key, 3)

    x = jax.random.normal(kx, (batch, seq, dim), dtype=jnp.float32)
    # Deterministic nn.Linear-style uniform init, pre-transposed to
    # (in_features, out_features).
    bound_qkv = 1.0 / (dim ** 0.5)
    bound_out = 1.0 / (inner ** 0.5)
    w_qkv = jax.random.uniform(
        kqkv, (dim, 3 * inner), jnp.float32, -bound_qkv, bound_qkv
    )
    w_out = jax.random.uniform(
        kout, (inner, dim), jnp.float32, -bound_out, bound_out
    )

    out = attention_forward(x, w_qkv, w_out, heads=heads, dim_head=dim_head)
    out = jax.block_until_ready(out)

    ref = _reference_forward(x, w_qkv, w_out, heads=heads, dim_head=dim_head)
    assert out.shape == (batch, seq, dim)
    # Tolerance accommodates bf16 matmul operands (softmax itself is exact f32);
    # observed max abs error is ~1e-2; structural bugs would be orders larger.
    max_err = float(jnp.max(jnp.abs(out - ref)))
    assert jnp.allclose(out, ref, atol=3e-2, rtol=3e-2), (
        f"mismatch vs reference (max abs err {max_err})")

    print("KERNEL_OK")
</pallas_src>

<mosaic_0001>
module attributes {stable_mosaic.version = 11 : i64} {
  func.func @_fused_attention_kernel(%arg0: i32, %arg1: memref<2x8x32xf32, #tpu.memory_space<vmem>>, %arg2: memref<32x96xbf16, #tpu.memory_space<vmem>>, %arg3: memref<32x32xbf16, #tpu.memory_space<vmem>>, %arg4: memref<2x8x32xf32, #tpu.memory_space<vmem>>, %arg5: memref<2x8x32xf32, #tpu.memory_space<vmem>>) attributes {dimension_semantics = [#tpu.dimension_semantics<parallel>], iteration_bounds = array<i64: 2>, scalar_prefetch = 0 : i64, scratch_operands = 1 : i64, tpu.core_type = #tpu.core_type<tc>, window_params = [{transform_indices = @transform_0, window_bounds = array<i64: 2, 8, 32>}, {pipeline_mode = #tpu.pipeline_mode<synchronous>, transform_indices = @transform_1, window_bounds = array<i64: 32, 96>}, {pipeline_mode = #tpu.pipeline_mode<synchronous>, transform_indices = @transform_2, window_bounds = array<i64: 32, 32>}, {transform_indices = @transform_3, window_bounds = array<i64: 2, 8, 32>}]} {
    %c0 = arith.constant 0 : index
    %c0_0 = arith.constant 0 : index
    %c0_1 = arith.constant 0 : index
    %0 = vector.load %arg1[%c0, %c0_0, %c0_1] : memref<2x8x32xf32, #tpu.memory_space<vmem>>, vector<2x8x32xf32>
    %1 = vector.shape_cast %0 : vector<2x8x32xf32> to vector<16x32xf32>
    %2 = arith.truncf %1 : vector<16x32xf32> to vector<16x32xbf16>
    %c0_2 = arith.constant 0 : index
    %c0_3 = arith.constant 0 : index
    %3 = vector.load %arg2[%c0_2, %c0_3] : memref<32x96xbf16, #tpu.memory_space<vmem>>, vector<32x96xbf16>
    %cst = arith.constant dense<0.000000e+00> : vector<16x96xf32>
    %4 = tpu.matmul %2, %3, %cst {dimension_numbers = #tpu.dot_dimension_numbers<[1], [0], [0], [1], [0, 0, 1, 1], [], []>} : vector<16x32xbf16>, vector<32x96xbf16>, vector<16x96xf32> -> vector<16x96xf32>
    %5 = vector.shape_cast %4 : vector<16x96xf32> to vector<2x8x96xf32>
    %6 = arith.truncf %5 : vector<2x8x96xf32> to vector<2x8x96xbf16>
    %7 = vector.extract_strided_slice %6 {offsets = [0, 0, 0], sizes = [2, 8, 8], strides = [1, 1, 1]} : vector<2x8x96xbf16> to vector<2x8x8xbf16>
    %8 = vector.extract_strided_slice %6 {offsets = [0, 0, 32], sizes = [2, 8, 8], strides = [1, 1, 1]} : vector<2x8x96xbf16> to vector<2x8x8xbf16>
    %9 = vector.extract_strided_slice %6 {offsets = [0, 0, 64], sizes = [2, 8, 8], strides = [1, 1, 1]} : vector<2x8x96xbf16> to vector<2x8x8xbf16>
    "tpu.trace_start"() <{level = 10 : i32, message = "bqd,bkd->bqk"}> : () -> ()
    %cst_4 = arith.constant dense<0.000000e+00> : vector<2x8x8xf32>
    %10 = tpu.matmul %7, %8, %cst_4 {dimension_numbers = #tpu.dot_dimension_numbers<[2], [2], [1], [1], [0, 0, 0, 1, 1, 1], [0], [0]>} : vector<2x8x8xbf16>, vector<2x8x8xbf16>, vector<2x8x8xf32> -> vector<2x8x8xf32>
    "tpu.trace_stop"() : () -> ()
    %cst_5 = arith.constant dense<0xFF800000> : vector<2x8xf32>
    %11 = vector.multi_reduction <maximumf>, %10, %cst_5 [2] : vector<2x8x8xf32> to vector<2x8xf32>
    %12 = vector.shape_cast %11 : vector<2x8xf32> to vector<2x8x1xf32>
    %13 = vector.broadcast %12 : vector<2x8x1xf32> to vector<2x8x8xf32>
    %14 = arith.subf %10, %13 : vector<2x8x8xf32>
    %15 = math.exp %14 : vector<2x8x8xf32>
    %cst_6 = arith.constant dense<0.000000e+00> : vector<2x8xf32>
    %16 = vector.multi_reduction <add>, %15, %cst_6 [2] : vector<2x8x8xf32> to vector<2x8xf32>
    %17 = vector.shape_cast %16 : vector<2x8xf32> to vector<2x8x1xf32>
    %18 = vector.broadcast %17 : vector<2x8x1xf32> to vector<2x8x8xf32>
    %19 = arith.divf %15, %18 : vector<2x8x8xf32>
    %20 = arith.truncf %19 : vector<2x8x8xf32> to vector<2x8x8xbf16>
    "tpu.trace_start"() <{level = 10 : i32, message = "bqk,bkd->bqd"}> : () -> ()
    %cst_7 = arith.constant dense<0.000000e+00> : vector<2x8x8xf32>
    %21 = tpu.matmul %20, %9, %cst_7 {dimension_numbers = #tpu.dot_dimension_numbers<[2], [1], [1], [2], [0, 0, 0, 1, 1, 2], [0], [0]>} : vector<2x8x8xbf16>, vector<2x8x8xbf16>, vector<2x8x8xf32> -> vector<2x8x8xf32>
    "tpu.trace_stop"() : () -> ()
    %c0_8 = arith.constant 0 : index
    %c0_9 = arith.constant 0 : index
    %c0_10 = arith.constant 0 : index
    %22 = vector.load %arg5[%c0_8, %c0_9, %c0_10] : memref<2x8x32xf32, #tpu.memory_space<vmem>>, vector<2x8x8xf32>
    tpu.vector_store %arg5[%c0_8, %c0_9, %c0_10], %21 {strides = array<i32>} : memref<2x8x32xf32, #tpu.memory_space<vmem>>, vector<2x8x8xf32>,
    %23 = vector.extract_strided_slice %6 {offsets = [0, 0, 8], sizes = [2, 8, 8], strides = [1, 1, 1]} : vector<2x8x96xbf16> to vector<2x8x8xbf16>
    %24 = vector.extract_strided_slice %6 {offsets = [0, 0, 40], sizes = [2, 8, 8], strides = [1, 1, 1]} : vector<2x8x96xbf16> to vector<2x8x8xbf16>
    %25 = vector.extract_strided_slice %6 {offsets = [0, 0, 72], sizes = [2, 8, 8], strides = [1, 1, 1]} : vector<2x8x96xbf16> to vector<2x8x8xbf16>
    "tpu.trace_start"() <{level = 10 : i32, message = "bqd,bkd->bqk"}> : () -> ()
    %cst_11 = arith.constant dense<0.000000e+00> : vector<2x8x8xf32>
    %26 = tpu.matmul %23, %24, %cst_11 {dimension_numbers = #tpu.dot_dimension_numbers<[2], [2], [1], [1], [0, 0, 0, 1, 1, 1], [0], [0]>} : vector<2x8x8xbf16>, vector<2x8x8xbf16>, vector<2x8x8xf32> -> vector<2x8x8xf32>
    "tpu.trace_stop"() : () -> ()
    %cst_12 = arith.constant dense<0xFF800000> : vector<2x8xf32>
    %27 = vector.multi_reduction <maximumf>, %26, %cst_12 [2] : vector<2x8x8xf32> to vector<2x8xf32>
    %28 = vector.shape_cast %27 : vector<2x8xf32> to vector<2x8x1xf32>
    %29 = vector.broadcast %28 : vector<2x8x1xf32> to vector<2x8x8xf32>
    %30 = arith.subf %26, %29 : vector<2x8x8xf32>
    %31 = math.exp %30 : vector<2x8x8xf32>
    %cst_13 = arith.constant dense<0.000000e+00> : vector<2x8xf32>
    %32 = vector.multi_reduction <add>, %31, %cst_13 [2] : vector<2x8x8xf32> to vector<2x8xf32>
    %33 = vector.shape_cast %32 : vector<2x8xf32> to vector<2x8x1xf32>
    %34 = vector.broadcast %33 : vector<2x8x1xf32> to vector<2x8x8xf32>
    %35 = arith.divf %31, %34 : vector<2x8x8xf32>
    %36 = arith.truncf %35 : vector<2x8x8xf32> to vector<2x8x8xbf16>
    "tpu.trace_start"() <{level = 10 : i32, message = "bqk,bkd->bqd"}> : () -> ()
    %cst_14 = arith.constant dense<0.000000e+00> : vector<2x8x8xf32>
    %37 = tpu.matmul %36, %25, %cst_14 {dimension_numbers = #tpu.dot_dimension_numbers<[2], [1], [1], [2], [0, 0, 0, 1, 1, 2], [0], [0]>} : vector<2x8x8xbf16>, vector<2x8x8xbf16>, vector<2x8x8xf32> -> vector<2x8x8xf32>
    "tpu.trace_stop"() : () -> ()
    %c0_15 = arith.constant 0 : index
    %c0_16 = arith.constant 0 : index
    %c8 = arith.constant 8 : index
    %38 = vector.load %arg5[%c0_15, %c0_16, %c8] : memref<2x8x32xf32, #tpu.memory_space<vmem>>, vector<2x8x8xf32>
    tpu.vector_store %arg5[%c0_15, %c0_16, %c8], %37 {strides = array<i32>} : memref<2x8x32xf32, #tpu.memory_space<vmem>>, vector<2x8x8xf32>,
    %39 = vector.extract_strided_slice %6 {offsets = [0, 0, 16], sizes = [2, 8, 8], strides = [1, 1, 1]} : vector<2x8x96xbf16> to vector<2x8x8xbf16>
    %40 = vector.extract_strided_slice %6 {offsets = [0, 0, 48], sizes = [2, 8, 8], strides = [1, 1, 1]} : vector<2x8x96xbf16> to vector<2x8x8xbf16>
    %41 = vector.extract_strided_slice %6 {offsets = [0, 0, 80], sizes = [2, 8, 8], strides = [1, 1, 1]} : vector<2x8x96xbf16> to vector<2x8x8xbf16>
    "tpu.trace_start"() <{level = 10 : i32, message = "bqd,bkd->bqk"}> : () -> ()
    %cst_17 = arith.constant dense<0.000000e+00> : vector<2x8x8xf32>
    %42 = tpu.matmul %39, %40, %cst_17 {dimension_numbers = #tpu.dot_dimension_numbers<[2], [2], [1], [1], [0, 0, 0, 1, 1, 1], [0], [0]>} : vector<2x8x8xbf16>, vector<2x8x8xbf16>, vector<2x8x8xf32> -> vector<2x8x8xf32>
    "tpu.trace_stop"() : () -> ()
    %cst_18 = arith.constant dense<0xFF800000> : vector<2x8xf32>
    %43 = vector.multi_reduction <maximumf>, %42, %cst_18 [2] : vector<2x8x8xf32> to vector<2x8xf32>
    %44 = vector.shape_cast %43 : vector<2x8xf32> to vector<2x8x1xf32>
    %45 = vector.broadcast %44 : vector<2x8x1xf32> to vector<2x8x8xf32>
    %46 = arith.subf %42, %45 : vector<2x8x8xf32>
    %47 = math.exp %46 : vector<2x8x8xf32>
    %cst_19 = arith.constant dense<0.000000e+00> : vector<2x8xf32>
    %48 = vector.multi_reduction <add>, %47, %cst_19 [2] : vector<2x8x8xf32> to vector<2x8xf32>
    %49 = vector.shape_cast %48 : vector<2x8xf32> to vector<2x8x1xf32>
    %50 = vector.broadcast %49 : vector<2x8x1xf32> to vector<2x8x8xf32>
    %51 = arith.divf %47, %50 : vector<2x8x8xf32>
    %52 = arith.truncf %51 : vector<2x8x8xf32> to vector<2x8x8xbf16>
    "tpu.trace_start"() <{level = 10 : i32, message = "bqk,bkd->bqd"}> : () -> ()
    %cst_20 = arith.constant dense<0.000000e+00> : vector<2x8x8xf32>
    %53 = tpu.matmul %52, %41, %cst_20 {dimension_numbers = #tpu.dot_dimension_numbers<[2], [1], [1], [2], [0, 0, 0, 1, 1, 2], [0], [0]>} : vector<2x8x8xbf16>, vector<2x8x8xbf16>, vector<2x8x8xf32> -> vector<2x8x8xf32>
    "tpu.trace_stop"() : () -> ()
    %c0_21 = arith.constant 0 : index
    %c0_22 = arith.constant 0 : index
    %c16 = arith.constant 16 : index
    %54 = vector.load %arg5[%c0_21, %c0_22, %c16] : memref<2x8x32xf32, #tpu.memory_space<vmem>>, vector<2x8x8xf32>
    tpu.vector_store %arg5[%c0_21, %c0_22, %c16], %53 {strides = array<i32>} : memref<2x8x32xf32, #tpu.memory_space<vmem>>, vector<2x8x8xf32>,
    %55 = vector.extract_strided_slice %6 {offsets = [0, 0, 24], sizes = [2, 8, 8], strides = [1, 1, 1]} : vector<2x8x96xbf16> to vector<2x8x8xbf16>
    %56 = vector.extract_strided_slice %6 {offsets = [0, 0, 56], sizes = [2, 8, 8], strides = [1, 1, 1]} : vector<2x8x96xbf16> to vector<2x8x8xbf16>
    %57 = vector.extract_strided_slice %6 {offsets = [0, 0, 88], sizes = [2, 8, 8], strides = [1, 1, 1]} : vector<2x8x96xbf16> to vector<2x8x8xbf16>
    "tpu.trace_start"() <{level = 10 : i32, message = "bqd,bkd->bqk"}> : () -> ()
    %cst_23 = arith.constant dense<0.000000e+00> : vector<2x8x8xf32>
    %58 = tpu.matmul %55, %56, %cst_23 {dimension_numbers = #tpu.dot_dimension_numbers<[2], [2], [1], [1], [0, 0, 0, 1, 1, 1], [0], [0]>} : vector<2x8x8xbf16>, vector<2x8x8xbf16>, vector<2x8x8xf32> -> vector<2x8x8xf32>
    "tpu.trace_stop"() : () -> ()
    %cst_24 = arith.constant dense<0xFF800000> : vector<2x8xf32>
    %59 = vector.multi_reduction <maximumf>, %58, %cst_24 [2] : vector<2x8x8xf32> to vector<2x8xf32>
    %60 = vector.shape_cast %59 : vector<2x8xf32> to vector<2x8x1xf32>
    %61 = vector.broadcast %60 : vector<2x8x1xf32> to vector<2x8x8xf32>
    %62 = arith.subf %58, %61 : vector<2x8x8xf32>
    %63 = math.exp %62 : vector<2x8x8xf32>
    %cst_25 = arith.constant dense<0.000000e+00> : vector<2x8xf32>
    %64 = vector.multi_reduction <add>, %63, %cst_25 [2] : vector<2x8x8xf32> to vector<2x8xf32>
    %65 = vector.shape_cast %64 : vector<2x8xf32> to vector<2x8x1xf32>
    %66 = vector.broadcast %65 : vector<2x8x1xf32> to vector<2x8x8xf32>
    %67 = arith.divf %63, %66 : vector<2x8x8xf32>
    %68 = arith.truncf %67 : vector<2x8x8xf32> to vector<2x8x8xbf16>
    "tpu.trace_start"() <{level = 10 : i32, message = "bqk,bkd->bqd"}> : () -> ()
    %cst_26 = arith.constant dense<0.000000e+00> : vector<2x8x8xf32>
    %69 = tpu.matmul %68, %57, %cst_26 {dimension_numbers = #tpu.dot_dimension_numbers<[2], [1], [1], [2], [0, 0, 0, 1, 1, 2], [0], [0]>} : vector<2x8x8xbf16>, vector<2x8x8xbf16>, vector<2x8x8xf32> -> vector<2x8x8xf32>
    "tpu.trace_stop"() : () -> ()
    %c0_27 = arith.constant 0 : index
    %c0_28 = arith.constant 0 : index
    %c24 = arith.constant 24 : index
    %70 = vector.load %arg5[%c0_27, %c0_28, %c24] : memref<2x8x32xf32, #tpu.memory_space<vmem>>, vector<2x8x8xf32>
    tpu.vector_store %arg5[%c0_27, %c0_28, %c24], %69 {strides = array<i32>} : memref<2x8x32xf32, #tpu.memory_space<vmem>>, vector<2x8x8xf32>,
    %c0_29 = arith.constant 0 : index
    %c0_30 = arith.constant 0 : index
    %c0_31 = arith.constant 0 : index
    %71 = vector.load %arg5[%c0_29, %c0_30, %c0_31] : memref<2x8x32xf32, #tpu.memory_space<vmem>>, vector<2x8x32xf32>
    %72 = vector.shape_cast %71 : vector<2x8x32xf32> to vector<16x32xf32>
    %73 = arith.truncf %72 : vector<16x32xf32> to vector<16x32xbf16>
    %c0_32 = arith.constant 0 : index
    %c0_33 = arith.constant 0 : index
    %74 = vector.load %arg3[%c0_32, %c0_33] : memref<32x32xbf16, #tpu.memory_space<vmem>>, vector<32x32xbf16>
    %cst_34 = arith.constant dense<0.000000e+00> : vector<16x32xf32>
    %75 = tpu.matmul %73, %74, %cst_34 {dimension_numbers = #tpu.dot_dimension_numbers<[1], [0], [0], [1], [0, 0, 1, 1], [], []>} : vector<16x32xbf16>, vector<32x32xbf16>, vector<16x32xf32> -> vector<16x32xf32>
    %76 = vector.shape_cast %75 : vector<16x32xf32> to vector<2x8x32xf32>
    %c0_35 = arith.constant 0 : index
    %c0_36 = arith.constant 0 : index
    %c0_37 = arith.constant 0 : index
    %77 = vector.load %arg4[%c0_35, %c0_36, %c0_37] : memref<2x8x32xf32, #tpu.memory_space<vmem>>, vector<2x8x32xf32>
    tpu.vector_store %arg4[%c0_35, %c0_36, %c0_37], %76 {strides = array<i32>} : memref<2x8x32xf32, #tpu.memory_space<vmem>>, vector<2x8x32xf32>,
    return
  }
  func.func @transform_0(%arg0: i32) -> (i32, i32, i32) {
    %c0_i32 = arith.constant 0 : i32
    %c0_i32_0 = arith.constant 0 : i32
    %c0_i32_1 = arith.constant 0 : i32
    return %arg0, %c0_i32, %c0_i32_0 : i32, i32, i32
  }
  func.func @transform_1(%arg0: i32) -> (i32, i32) {
    %c0_i32 = arith.constant 0 : i32
    %c0_i32_0 = arith.constant 0 : i32
    %c0_i32_1 = arith.constant 0 : i32
    return %c0_i32, %c0_i32_0 : i32, i32
  }
  func.func @transform_2(%arg0: i32) -> (i32, i32) {
    %c0_i32 = arith.constant 0 : i32
    %c0_i32_0 = arith.constant 0 : i32
    %c0_i32_1 = arith.constant 0 : i32
    return %c0_i32, %c0_i32_0 : i32, i32
  }
  func.func @transform_3(%arg0: i32) -> (i32, i32, i32) {
    %c0_i32 = arith.constant 0 : i32
    %c0_i32_0 = arith.constant 0 : i32
    %c0_i32_1 = arith.constant 0 : i32
    return %arg0, %c0_i32, %c0_i32_0 : i32, i32, i32
  }
}

</mosaic_0001>

<llo_original>
// kernel: tpu_custom_call.1
$region0: #{tpu_custom_call.1}
  #allocation0 [shape = 'u32[]', space=smem, size = 0x4, offset = 0x4, fixed_abs, tag = 'smem constant byte address 0x4 - core index']
  #allocation1 [shape = 'u32[72,128]{1,0:T(1,128)}', space=vmem, size = 0x9000, scoped, tag = 'internal scratch']
  #allocation2 [shape = 'f32[2,8,32]{2,1,0:T(8,128)}', space=vmem, size = 0x2000, scoped, tag = 'scratch operand']
  %s0 = inlined_call_operand.hbm [shape: f32[4,8,32], index: 0, kind: input, shape index: {}]
  %s1 = inlined_call_operand.hbm [shape: bf16[32,96], index: 1, kind: input, shape index: {}]
  %s2 = inlined_call_operand.hbm [shape: bf16[32,32], index: 2, kind: input, shape index: {}]
  %s3 = inlined_call_operand.hbm [shape: f32[4,8,32], index: 3, kind: output, shape index: {}]
  %s4 = sld [smem:[#allocation0]]
  $region57: #{tpu_custom_call.1} parent=0
    _
  %s6 = ssub.s32 1, %s4
  %s7 = scalar_select 0, %s6, %s4
  $region1: #{tpu_custom_call.1} parent=0
    #allocation3 [shape = 'u8[16384]{0}', space=vmem, size = 0x4000, scoped, tag = 'input window, operand 0']
    #allocation4 [shape = 's32[2]{0}', space=sflag, size = 0x8, scoped, tag = 'scoped memory for tpu_custom_call.1']
    #allocation5 [shape = 's32[2]{0}', space=sflag, size = 0x8, scoped, tag = 'scoped memory for tpu_custom_call.1']
    #allocation6 [shape = 'u8[8192]{0}', space=vmem, size = 0x2000, scoped, tag = 'input window, operand 1, single buffered']
    #allocation7 [shape = 's32[1]{0}', space=sflag, size = 0x4, scoped, tag = 'scoped memory for tpu_custom_call.1']
    #allocation8 [shape = 'u8[8192]{0}', space=vmem, size = 0x2000, scoped, tag = 'input window, operand 2, single buffered']
    #allocation9 [shape = 'u8[16384]{0}', space=vmem, size = 0x4000, scoped, tag = 'output window, operand 0']
    %8 = vsyncpa [#allocation4], 0
    %s9 = scalar_lea.sflag [#allocation4], 1
    %10 = vsyncpa %s9, 0
    %11 = vsyncpa [#allocation7], 0
    %12 = vsyncpa [#allocation5], 0
    %s13 = scalar_lea.sflag [#allocation5], 1
    %14 = vsyncpa %s13, 0
    loop: start=0, step=1, limit=4
    $region2: #{tpu_custom_call.1} parent=1 // loop_pre_header
      _
    $region3: #{tpu_custom_call.1} parent=1 // loop_header
      %s16 = sphi 0, %s20
      %p17 = scmp.ge.s32.totalorder %s16, 4
      %s26 = sphi 0, %s28
      %s29 = sphi 0, %s26
      %s30 = sphi 0, %s29
      %s46 = sphi 0, %s30
      %s50 = sphi 0, %s50
      %s52 = sphi 0, %s50
      %s53 = sphi 0, %s52
      %s67 = sphi 0, %s53
      %s71 = sphi 0, %s71
      %s73 = sphi 0, %s71
      %s74 = sphi 0, %s73
      %s88 = sphi 0, %s74
      %s94 = sphi 0, %s96
      %s97 = sphi 0, %s94
      %s98 = sphi 0, %s97
      %s114 = sphi 0, %s98
    $region4: #{tpu_custom_call.1} parent=1 // loop_header_branch
      %19 = sbr.rel (%p17) target = $region8
    $region5: #{tpu_custom_call.1} parent=1 // loop_body
      %s21 = ssub.s32 %s16, 1
      %s22 = ssub.s32 %s16, 2
      %s23 = sadd.s32 %s16, 1
      %s24 = ssub.s32 %s16, %s23
      %p25 = scmp.eq.s32.totalorder %s24, 0
      %s27 = sadd.s32 %s26, 1
      %s28 = scalar_select %p25, %s26, %s27
      %p31 = pneg %p25
      %p32 = scmp.eq.s32.totalorder %s16, 1
      %p33 = por %p31, %p32
      %p34 = scmp.ne.s32.totalorder %s26, %s29
      %p35 = scmp.eq.s32.totalorder %s16, 0
      %p36 = por %p34, %p35
      %p37 = scmp.ne.s32.totalorder %s26, %s29
      %p38 = scmp.eq.s32.totalorder %s21, 1
      %p39 = por %p37, %p38
      %p40 = scmp.ne.s32.totalorder %s29, %s30
      %p41 = scmp.eq.s32.totalorder %s21, 0
      %p42 = por %p40, %p41
      %p43 = scmp.ne.s32.totalorder %s29, %s30
      %p44 = scmp.eq.s32.totalorder %s22, 1
      %p45 = por %p43, %p44
      %p47 = scmp.ne.s32.totalorder %s30, %s46
      %p48 = scmp.eq.s32.totalorder %s22, 0
      %p49 = por %p47, %p48
      %s51 = sadd.s32 %s50, 1
      %p54 = scmp.eq.s32.totalorder %s16, 1
      %p55 = scmp.ne.s32.totalorder %s50, %s52
      %p56 = scmp.eq.s32.totalorder %s16, 0
      %p57 = por %p55, %p56
      %p58 = scmp.ne.s32.totalorder %s50, %s52
      %p59 = scmp.eq.s32.totalorder %s21, 1
      %p60 = por %p58, %p59
      %p61 = scmp.ne.s32.totalorder %s52, %s53
      %p62 = scmp.eq.s32.totalorder %s21, 0
      %p63 = por %p61, %p62
      %p64 = scmp.ne.s32.totalorder %s52, %s53
      %p65 = scmp.eq.s32.totalorder %s22, 1
      %p66 = por %p64, %p65
      %p68 = scmp.ne.s32.totalorder %s53, %s67
      %p69 = scmp.eq.s32.totalorder %s22, 0
      %p70 = por %p68, %p69
      %s72 = sadd.s32 %s71, 1
      %p75 = scmp.eq.s32.totalorder %s16, 1
      %p76 = scmp.ne.s32.totalorder %s71, %s73
      %p77 = scmp.eq.s32.totalorder %s16, 0
      %p78 = por %p76, %p77
      %p79 = scmp.ne.s32.totalorder %s71, %s73
      %p80 = scmp.eq.s32.totalorder %s21, 1
      %p81 = por %p79, %p80
      %p82 = scmp.ne.s32.totalorder %s73, %s74
      %p83 = scmp.eq.s32.totalorder %s21, 0
      %p84 = por %p82, %p83
      %p85 = scmp.ne.s32.totalorder %s73, %s74
      %p86 = scmp.eq.s32.totalorder %s22, 1
      %p87 = por %p85, %p86
      %p89 = scmp.ne.s32.totalorder %s74, %s88
      %p90 = scmp.eq.s32.totalorder %s22, 0
      %p91 = por %p89, %p90
      %s92 = ssub.s32 %s16, %s23
      %p93 = scmp.eq.s32.totalorder %s92, 0
      %s95 = sadd.s32 %s94, 1
      %s96 = scalar_select %p93, %s94, %s95
      %p99 = pneg %p93
      %p100 = scmp.eq.s32.totalorder %s16, 1
      %p101 = por %p99, %p100
      %p102 = scmp.ne.s32.totalorder %s94, %s97
      %p103 = scmp.eq.s32.totalorder %s16, 0
      %p104 = por %p102, %p103
      %p105 = scmp.ne.s32.totalorder %s94, %s97
      %p106 = scmp.eq.s32.totalorder %s21, 1
      %p107 = por %p105, %p106
      %p108 = scmp.ne.s32.totalorder %s97, %s98
      %p109 = scmp.eq.s32.totalorder %s21, 0
      %p110 = por %p108, %p109
      %p111 = scmp.ne.s32.totalorder %s97, %s98
      %p112 = scmp.eq.s32.totalorder %s22, 1
      %p113 = por %p111, %p112
      %p115 = scmp.ne.s32.totalorder %s98, %s114
      %p116 = scmp.eq.s32.totalorder %s22, 0
      %p117 = por %p115, %p116
      %p118 = scmp.le.s32.totalorder 1, %s16
      %p119 = scmp.lt.s32.totalorder %s16, 3
      %p120 = pnand %p118, %p119
      %p121 = pneg %p120
      // Predicated region
      $region9: #{tpu_custom_call.1} parent=5 // pred_check
        _
      $region10: #{tpu_custom_call.1} parent=5 // pred_check_branch
        %123 = sbr.rel (%p120) target = $region12
      $region11: #{tpu_custom_call.1} parent=5 // pred_region
        %s124 = ssub.s32 %s16, 1
        // Predicated region
        $region13: #{tpu_custom_call.1} parent=11 // pred_check
          %p125 = pneg %p63
        $region14: #{tpu_custom_call.1} parent=11 // pred_check_branch
          %127 = sbr.rel (%p125) target = $region16
        $region15: #{tpu_custom_call.1} parent=11 // pred_region
          %129 = vsyncadd [#allocation7], 0
          %s130 = sshll.u32 %s1, 4
          %s131 = int_to_ptr.hbm [resolvable:$true] %s130
          %s132 = sshll.u32 [#allocation6], 4
          %s133 = int_to_ptr.vmem [resolvable:$true] %s132
          %138 = dma.hbm_to_vmem [thread:$0]  %s131, 256, %s133, [#allocation7], 64, 64, 4
        $region16: #{tpu_custom_call.1} parent=11 // pred_fallthru
          _
        // Predicated region
        $region17: #{tpu_custom_call.1} parent=11 // pred_check
          %p139 = pneg %p84
        $region18: #{tpu_custom_call.1} parent=11 // pred_check_branch
          %141 = sbr.rel (%p139) target = $region20
        $region19: #{tpu_custom_call.1} parent=11 // pred_region
          %143 = vsyncadd [#allocation7], 0
          %s144 = sshll.u32 %s2, 4
          %s145 = int_to_ptr.hbm [resolvable:$true] %s144
          %s146 = sshll.u32 [#allocation8], 4
          %s147 = int_to_ptr.vmem [resolvable:$true] %s146
          %152 = dma.hbm_to_vmem [thread:$0]  %s145, 256, %s147, [#allocation7], 64, 64, 4
        $region20: #{tpu_custom_call.1} parent=11 // pred_fallthru
          _
      $region12: #{tpu_custom_call.1} parent=5 // pred_fallthru
        _
      %p153 = scmp.lt.s32.totalorder %s16, 2
      // Predicated region
      $region21: #{tpu_custom_call.1} parent=5 // pred_check
        %p154 = pneg %p153
      $region22: #{tpu_custom_call.1} parent=5 // pred_check_branch
        %156 = sbr.rel (%p154) target = $region24
      $region23: #{tpu_custom_call.1} parent=5 // pred_region
        // Predicated region
        $region25: #{tpu_custom_call.1} parent=23 // pred_check
          %p157 = pneg %p36
        $region26: #{tpu_custom_call.1} parent=23 // pred_check_branch
          %159 = sbr.rel (%p157) target = $region28
        $region27: #{tpu_custom_call.1} parent=23 // pred_region
          %s160 = sand.u32 %s26, 1
          %s161 = scalar_lea.sflag [#allocation4], %s160
          %s162 = sand.u32 %s26, 1
          %s163 = smul.addr %s162, 16
          %s164 = scalar_lea.vmem [#allocation3], %s163
          %s165 = smul.u32 2, %s16
          %167 = vsyncadd %s161, 0
          %s168 = smul.addr %s165, 8
          %s169 = scalar_lea.hbm %s0, %s168
          %s170 = sshll.u32 %s169, 4
          %s171 = int_to_ptr.hbm [resolvable:$true] %s170
          %s172 = sshll.u32 %s164, 4
          %s173 = int_to_ptr.vmem [resolvable:$true] %s172
          %178 = dma.hbm_to_vmem [thread:$0]  %s171, 256, %s173, %s161, 128, 128, 8
        $region28: #{tpu_custom_call.1} parent=23 // pred_fallthru
          _
      $region24: #{tpu_custom_call.1} parent=5 // pred_fallthru
        _
      %p179 = scmp.le.s32.totalorder 1, %s16
      %p180 = scmp.lt.s32.totalorder %s16, 3
      %p181 = pnand %p179, %p180
      %p182 = pneg %p181
      // Predicated region
      $region29: #{tpu_custom_call.1} parent=5 // pred_check
        _
      $region30: #{tpu_custom_call.1} parent=5 // pred_check_branch
        %184 = sbr.rel (%p181) target = $region32
      $region31: #{tpu_custom_call.1} parent=5 // pred_region
        %s185 = ssub.s32 %s16, 1
        %s186 = sand.u32 %s29, 1
        %s187 = scalar_lea.sflag [#allocation4], %s186
        %s188 = sand.u32 %s29, 1
        %s189 = smul.addr %s188, 16
        %s190 = scalar_lea.vmem [#allocation3], %s189
        // Predicated region
        $region33: #{tpu_custom_call.1} parent=31 // pred_check
          %p191 = pneg %p42
        $region34: #{tpu_custom_call.1} parent=31 // pred_check_branch
          %193 = sbr.rel (%p191) target = $region36
        $region35: #{tpu_custom_call.1} parent=31 // pred_region
          %195 = dma.done %s187, 256
        $region36: #{tpu_custom_call.1} parent=31 // pred_fallthru
          _
        // Predicated region
        $region37: #{tpu_custom_call.1} parent=31 // pred_check
          %p196 = pneg %p63
        $region38: #{tpu_custom_call.1} parent=31 // pred_check_branch
          %198 = sbr.rel (%p196) target = $region40
        $region39: #{tpu_custom_call.1} parent=31 // pred_region
          %200 = dma.done [#allocation7], 256
        $region40: #{tpu_custom_call.1} parent=31 // pred_fallthru
          _
        // Predicated region
        $region41: #{tpu_custom_call.1} parent=31 // pred_check
          %p201 = pneg %p84
        $region42: #{tpu_custom_call.1} parent=31 // pred_check_branch
          %203 = sbr.rel (%p201) target = $region44
        $region43: #{tpu_custom_call.1} parent=31 // pred_region
          %205 = dma.done [#allocation7], 256
        $region44: #{tpu_custom_call.1} parent=31 // pred_fallthru
          _
        %s206 = sand.u32 %s29, 1
        %s207 = scalar_lea.sflag [#allocation4], %s206
        %s208 = sand.u32 %s29, 1
        %s209 = smul.addr %s208, 16
        %s210 = scalar_lea.vmem [#allocation3], %s209
        %p211 = pneg %p42
        %p212 = pneg %p39
        %p213 = pneg %p63
        %p214 = pneg %p60
        %p215 = pneg %p84
        %p216 = pneg %p81
        %p217 = pneg %p110
        %p218 = pneg %p107
        %s219 = sand.u32 %s97, 1
        %s220 = scalar_lea.sflag [#allocation5], %s219
        %s221 = sand.u32 %s97, 1
        %s222 = smul.addr %s221, 16
        %s223 = scalar_lea.vmem [#allocation9], %s222
        %s224 = smul.u32 2, %s21
        %s225 = smul.u32 2, %s21
        %v227 = vld [vmem:[%s190] sm:$0xff]
        %v228 = vld [vmem:[%s190 + $0x8] sm:$0xff]
        %v229 = vpack.c.bf16 %v228, %v227
        %v230 = vld [vmem:[#allocation6] sm:$0xf]
        %v231 = vld [vmem:[#allocation6 + $0x4] sm:$0xf]
        %v232 = vld [vmem:[#allocation6 + $0x8] sm:$0xf]
        %v233 = vld [vmem:[#allocation6 + $0xc] sm:$0xf]
        %v238 = vunpack.c.l.b16 %v230
        %v239 = vunpack.c.l.b16 %v231
        %v240 = vunpack.c.l.b16 %v232
        %v241 = vunpack.c.l.b16 %v233
        %v242 = vpack.c.b16 %v239, %v238
        %v243 = vpack.c.b16 %v241, %v240
        %vm246 = vcmask 261120
        %v248 = vsel %vm246, %v229, 0
        %250 = vmatpush.bf16.msra.mxu0 0
        %251 = vmatpush.bf16.msra.mxu0 0
        %252 = vmatpush.bf16.msra.mxu0 0
        %253 = vmatpush.bf16.msra.mxu0 0
        %254 = vmatpush.bf16.msra.mxu0 0
        %255 = vmatpush.bf16.msra.mxu0 0
        %256 = vmatpush.bf16.msra.mxu0 %v243
        %257 = vmatpush.bf16.msra.mxu0 %v242
        %258 = vmatmul.bf16.gmra.mxu0 %v248
        %v259 = vpop.f32.mrf.mxu0
        %v260 = vadd.f32 0.0, %v259
        %v261 = vpop.f32.mrf.mxu0
        %v262 = vadd.f32 0.0, %v261
        %263 = vdwg.mxu0
        %v264 = vpack.c.bf16 %v260, %v260
        %v265 = vpack.c.bf16 %v262, %v262
        %v267 = vunpack.c.l.b16 %v264
        %v268 = vpack.c.b16 %v267, %v267
        %269 = vrot.lane.b32.xlu0 %v268, 96
        %v270 = vpop.permute.xlu0 %269
        %vm271 = vcmask 64512
        %v273 = vsel %vm271, %v264, 0
        %v276 = vsel %vm271, %v270, 0
        %278 = vmatpush.bf16.xpose.msra.mxu0 0
        %279 = vmatpush.bf16.xpose.msra.mxu0 0
        %280 = vmatpush.bf16.xpose.msra.mxu0 0
        %281 = vmatpush.bf16.xpose.msra.mxu0 0
        %282 = vmatpush.bf16.xpose.msra.mxu0 0
        %283 = vmatpush.bf16.xpose.msra.mxu0 0
        %284 = vmatpush.bf16.xpose.msra.mxu0 0
        %285 = vmatpush.bf16.xpose.msra.mxu0 %v276
        %286 = vmatmul.bf16.gmra.mxu0 %v273
        %v287 = vpop.f32.mrf.mxu0
        %v288 = vadd.f32 0.0, %v287
        %v289 = vpop.f32.mrf.mxu0
        %290 = vdwg.mxu0
        %v292 = vunpack.c.l.b16 %v265
        %v293 = vpack.c.b16 %v292, %v292
        %294 = vrot.lane.b32.xlu0 %v293, 96
        %v295 = vpop.permute.xlu0 %294
        %v297 = vsel %vm271, %v265, 0
        %v300 = vsel %vm271, %v295, 0
        %302 = vmatpush.bf16.xpose.msra.mxu0 0
        %303 = vmatpush.bf16.xpose.msra.mxu0 0
        %304 = vmatpush.bf16.xpose.msra.mxu0 0
        %305 = vmatpush.bf16.xpose.msra.mxu0 0
        %306 = vmatpush.bf16.xpose.msra.mxu0 0
        %307 = vmatpush.bf16.xpose.msra.mxu0 0
        %308 = vmatpush.bf16.xpose.msra.mxu0 0
        %309 = vmatpush.bf16.xpose.msra.mxu0 %v300
        %310 = vmatmul.bf16.gmra.mxu0 %v297
        %v311 = vpop.f32.mrf.mxu0
        %v312 = vadd.f32 0.0, %v311
        %v313 = vpop.f32.mrf.mxu0
        %314 = vdwg.mxu0
        %v315 = vsel %vm271, %v288, -inf
        %316 = vmax.xlane.f32.xlu0 %v315
        %v317 = vpop.xlane.xlu0 %316
        %v318 = vsel %vm271, %v312, -inf
        %319 = vmax.xlane.f32.xlu0 %v318
        %v320 = vpop.xlane.xlu0 %319
        %v321 = vsub.f32 %v288, %v317
        %v322 = vsub.f32 %v312, %v320
        %v323 = vmul.f32 %v321, 1.442695
        %v324 = vpow.pop %v323
        %v325 = vmul.f32 %v322, 1.442695
        %v326 = vpow.pop %v325
        %v327 = vsel %vm271, %v324, 0.0
        %328 = vadd.xlane.f32.xlu0 %v327
        %v329 = vpop.xlane.xlu0 %328
        %v330 = vsel %vm271, %v326, 0.0
        %331 = vadd.xlane.f32.xlu0 %v330
        %v332 = vpop.xlane.xlu0 %331
        %v333 = vrcp.pop %v329
        %v334 = vmul.f32 %v329, %v333
        %v335 = vsub.f32 1.0, %v334
        %v336 = vmul.f32 %v333, %v335
        %v337 = vadd.f32 %v333, %v336
        %vm338 = vweird.f32 %v329
        %vm339 = vweird.f32 %v333
        %vm340 = vmor %vm338, %vm339
        %v341 = vsel %vm340, %v333, %v337
        %v342 = vand.u32 2147483647, %v329
        %vm343 = vcmp.eq.f32.partialorder %v342, 8.507059e+37
        %v344 = vand.u32 %v329, 2147483648
        %v345 = vor.u32 1.1754944e-38, %v344
        %v346 = vsel %vm343, %v345, %v341
        %v347 = vmul.f32 %v324, %v346
        %v348 = vrcp.pop %v332
        %v349 = vmul.f32 %v332, %v348
        %v350 = vsub.f32 1.0, %v349
        %v351 = vmul.f32 %v348, %v350
        %v352 = vadd.f32 %v348, %v351
        %vm353 = vweird.f32 %v332
        %vm354 = vweird.f32 %v348
        %vm355 = vmor %vm353, %vm354
        %v356 = vsel %vm355, %v348, %v352
        %v357 = vand.u32 2147483647, %v332
        %vm358 = vcmp.eq.f32.partialorder %v357, 8.507059e+37
        %v359 = vand.u32 %v332, 2147483648
        %v360 = vor.u32 1.1754944e-38, %v359
        %v361 = vsel %vm358, %v360, %v356
        %v362 = vmul.f32 %v326, %v361
        %v363 = vpack.c.bf16 %v347, %v347
        %v364 = vpack.c.bf16 %v362, %v362
        %365 = vrot.lane.b32.xlu0 %v268, 64
        %v366 = vpop.permute.xlu0 %365
        %v368 = vsel %vm271, %v363, 0
        %vm370 = vcmask 1043456
        %v372 = vsel %vm370, %v366, 0
        %374 = vmatpush.bf16.msra.mxu0 0
        %375 = vmatpush.bf16.msra.mxu0 0
        %376 = vmatpush.bf16.msra.mxu0 0
        %377 = vmatpush.bf16.msra.mxu0 0
        %378 = vmatpush.bf16.msra.mxu0 0
        %379 = vmatpush.bf16.msra.mxu0 0
        %380 = vmatpush.bf16.msra.mxu0 0
        %381 = vmatpush.bf16.msra.mxu0 %v372
        %382 = vmatmul.bf16.gmra.mxu0 %v368
        %v383 = vpop.f32.mrf.mxu0
        %v384 = vadd.f32 0.0, %v383
        %v385 = vpop.f32.mrf.mxu0
        %386 = vdwg.mxu0
        %387 = vrot.lane.b32.xlu0 %v293, 64
        %v388 = vpop.permute.xlu0 %387
        %v390 = vsel %vm271, %v364, 0
        %v393 = vsel %vm370, %v388, 0
        %395 = vmatpush.bf16.msra.mxu0 0
        %396 = vmatpush.bf16.msra.mxu0 0
        %397 = vmatpush.bf16.msra.mxu0 0
        %398 = vmatpush.bf16.msra.mxu0 0
        %399 = vmatpush.bf16.msra.mxu0 0
        %400 = vmatpush.bf16.msra.mxu0 0
        %401 = vmatpush.bf16.msra.mxu0 0
        %402 = vmatpush.bf16.msra.mxu0 %v393
        %403 = vmatmul.bf16.gmra.mxu0 %v390
        %v404 = vpop.f32.mrf.mxu0
        %v405 = vadd.f32 0.0, %v404
        %v406 = vpop.f32.mrf.mxu0
        %407 = vdwg.mxu0
        %408 = vst.msk [vmem:[#allocation2] sm:$0xff] %vm271, %v384
        %409 = vst.msk [vmem:[#allocation2 + $0x8] sm:$0xff] %vm271, %v405
        %410 = vrot.lane.b32.xlu0 %v268, 120
        %v411 = vpop.permute.xlu0 %410
        %412 = vrot.lane.b32.xlu0 %v268, 88
        %v413 = vpop.permute.xlu0 %412
        %v415 = vsel %vm271, %v411, 0
        %v418 = vsel %vm271, %v413, 0
        %420 = vmatpush.bf16.xpose.msra.mxu0 0
        %421 = vmatpush.bf16.xpose.msra.mxu0 0
        %422 = vmatpush.bf16.xpose.msra.mxu0 0
        %423 = vmatpush.bf16.xpose.msra.mxu0 0
        %424 = vmatpush.bf16.xpose.msra.mxu0 0
        %425 = vmatpush.bf16.xpose.msra.mxu0 0
        %426 = vmatpush.bf16.xpose.msra.mxu0 0
        %427 = vmatpush.bf16.xpose.msra.mxu0 %v418
        %428 = vmatmul.bf16.gmra.mxu0 %v415
        %v429 = vpop.f32.mrf.mxu0
        %v430 = vadd.f32 0.0, %v429
        %v431 = vpop.f32.mrf.mxu0
        %432 = vdwg.mxu0
        %433 = vrot.lane.b32.xlu0 %v293, 120
        %v434 = vpop.permute.xlu0 %433
        %435 = vrot.lane.b32.xlu0 %v293, 88
        %v436 = vpop.permute.xlu0 %435
        %v438 = vsel %vm271, %v434, 0
        %v441 = vsel %vm271, %v436, 0
        %443 = vmatpush.bf16.xpose.msra.mxu0 0
        %444 = vmatpush.bf16.xpose.msra.mxu0 0
        %445 = vmatpush.bf16.xpose.msra.mxu0 0
        %446 = vmatpush.bf16.xpose.msra.mxu0 0
        %447 = vmatpush.bf16.xpose.msra.mxu0 0
        %448 = vmatpush.bf16.xpose.msra.mxu0 0
        %449 = vmatpush.bf16.xpose.msra.mxu0 0
        %450 = vmatpush.bf16.xpose.msra.mxu0 %v441
        %451 = vmatmul.bf16.gmra.mxu0 %v438
        %v452 = vpop.f32.mrf.mxu0
        %v453 = vadd.f32 0.0, %v452
        %v454 = vpop.f32.mrf.mxu0
        %455 = vdwg.mxu0
        %v456 = vsel %vm271, %v430, -inf
        %457 = vmax.xlane.f32.xlu0 %v456
        %v458 = vpop.xlane.xlu0 %457
        %v459 = vsel %vm271, %v453, -inf
        %460 = vmax.xlane.f32.xlu0 %v459
        %v461 = vpop.xlane.xlu0 %460
        %v462 = vsub.f32 %v430, %v458
        %v463 = vsub.f32 %v453, %v461
        %v464 = vmul.f32 %v462, 1.442695
        %v465 = vpow.pop %v464
        %v466 = vmul.f32 %v463, 1.442695
        %v467 = vpow.pop %v466
        %v468 = vsel %vm271, %v465, 0.0
        %469 = vadd.xlane.f32.xlu0 %v468
        %v470 = vpop.xlane.xlu0 %469
        %v471 = vsel %vm271, %v467, 0.0
        %472 = vadd.xlane.f32.xlu0 %v471
        %v473 = vpop.xlane.xlu0 %472
        %v474 = vrcp.pop %v470
        %v475 = vmul.f32 %v470, %v474
        %v476 = vsub.f32 1.0, %v475
        %v477 = vmul.f32 %v474, %v476
        %v478 = vadd.f32 %v474, %v477
        %vm479 = vweird.f32 %v470
        %vm480 = vweird.f32 %v474
        %vm481 = vmor %vm479, %vm480
        %v482 = vsel %vm481, %v474, %v478
        %v483 = vand.u32 2147483647, %v470
        %vm484 = vcmp.eq.f32.partialorder %v483, 8.507059e+37
        %v485 = vand.u32 %v470, 2147483648
        %v486 = vor.u32 1.1754944e-38, %v485
        %v487 = vsel %vm484, %v486, %v482
        %v488 = vmul.f32 %v465, %v487
        %v489 = vrcp.pop %v473
        %v490 = vmul.f32 %v473, %v489
        %v491 = vsub.f32 1.0, %v490
        %v492 = vmul.f32 %v489, %v491
        %v493 = vadd.f32 %v489, %v492
        %vm494 = vweird.f32 %v473
        %vm495 = vweird.f32 %v489
        %vm496 = vmor %vm494, %vm495
        %v497 = vsel %vm496, %v489, %v493
        %v498 = vand.u32 2147483647, %v473
        %vm499 = vcmp.eq.f32.partialorder %v498, 8.507059e+37
        %v500 = vand.u32 %v473, 2147483648
        %v501 = vor.u32 1.1754944e-38, %v500
        %v502 = vsel %vm499, %v501, %v497
        %v503 = vmul.f32 %v467, %v502
        %v504 = vpack.c.bf16 %v488, %v488
        %v505 = vpack.c.bf16 %v503, %v503
        %506 = vrot.lane.b32.xlu0 %v268, 56
        %v507 = vpop.permute.xlu0 %506
        %v509 = vsel %vm271, %v504, 0
        %v512 = vsel %vm370, %v507, 0
        %514 = vmatpush.bf16.msra.mxu0 0
        %515 = vmatpush.bf16.msra.mxu0 0
        %516 = vmatpush.bf16.msra.mxu0 0
        %517 = vmatpush.bf16.msra.mxu0 0
        %518 = vmatpush.bf16.msra.mxu0 0
        %519 = vmatpush.bf16.msra.mxu0 0
        %520 = vmatpush.bf16.msra.mxu0 0
        %521 = vmatpush.bf16.msra.mxu0 %v512
        %522 = vmatmul.bf16.gmra.mxu0 %v509
        %v523 = vpop.f32.mrf.mxu0
        %v524 = vadd.f32 0.0, %v523
        %v525 = vpop.f32.mrf.mxu0
        %526 = vdwg.mxu0
        %527 = vrot.lane.b32.xlu0 %v293, 56
        %v528 = vpop.permute.xlu0 %527
        %v530 = vsel %vm271, %v505, 0
        %v533 = vsel %vm370, %v528, 0
        %535 = vmatpush.bf16.msra.mxu0 0
        %536 = vmatpush.bf16.msra.mxu0 0
        %537 = vmatpush.bf16.msra.mxu0 0
        %538 = vmatpush.bf16.msra.mxu0 0
        %539 = vmatpush.bf16.msra.mxu0 0
        %540 = vmatpush.bf16.msra.mxu0 0
        %541 = vmatpush.bf16.msra.mxu0 0
        %542 = vmatpush.bf16.msra.mxu0 %v533
        %543 = vmatmul.bf16.gmra.mxu0 %v530
        %v544 = vpop.f32.mrf.mxu0
        %v545 = vadd.f32 0.0, %v544
        %v546 = vpop.f32.mrf.mxu0
        %547 = vdwg.mxu0
        %550 = vrot.lane.b32.xlu0 %v524, 8
        %v551 = vpop.permute.xlu0 %550
        %552 = vrot.lane.b32.xlu0 %v545, 8
        %v553 = vpop.permute.xlu0 %552
        %vm556 = vcmask 130112
        %557 = vst.msk [vmem:[#allocation2] sm:$0xff] %vm556, %v551
        %558 = vst.msk [vmem:[#allocation2 + $0x8] sm:$0xff] %vm556, %v553
        %559 = vrot.lane.b32.xlu0 %v268, 112
        %v560 = vpop.permute.xlu0 %559
        %561 = vrot.lane.b32.xlu0 %v268, 80
        %v562 = vpop.permute.xlu0 %561
        %v564 = vsel %vm271, %v560, 0
        %v567 = vsel %vm271, %v562, 0
        %569 = vmatpush.bf16.xpose.msra.mxu0 0
        %570 = vmatpush.bf16.xpose.msra.mxu0 0
        %571 = vmatpush.bf16.xpose.msra.mxu0 0
        %572 = vmatpush.bf16.xpose.msra.mxu0 0
        %573 = vmatpush.bf16.xpose.msra.mxu0 0
        %574 = vmatpush.bf16.xpose.msra.mxu0 0
        %575 = vmatpush.bf16.xpose.msra.mxu0 0
        %576 = vmatpush.bf16.xpose.msra.mxu0 %v567
        %577 = vmatmul.bf16.gmra.mxu0 %v564
        %v578 = vpop.f32.mrf.mxu0
        %v579 = vadd.f32 0.0, %v578
        %v580 = vpop.f32.mrf.mxu0
        %581 = vdwg.mxu0
        %582 = vrot.lane.b32.xlu0 %v293, 112
        %v583 = vpop.permute.xlu0 %582
        %584 = vrot.lane.b32.xlu0 %v293, 80
        %v585 = vpop.permute.xlu0 %584
        %v587 = vsel %vm271, %v583, 0
        %v590 = vsel %vm271, %v585, 0
        %592 = vmatpush.bf16.xpose.msra.mxu0 0
        %593 = vmatpush.bf16.xpose.msra.mxu0 0
        %594 = vmatpush.bf16.xpose.msra.mxu0 0
        %595 = vmatpush.bf16.xpose.msra.mxu0 0
        %596 = vmatpush.bf16.xpose.msra.mxu0 0
        %597 = vmatpush.bf16.xpose.msra.mxu0 0
        %598 = vmatpush.bf16.xpose.msra.mxu0 0
        %599 = vmatpush.bf16.xpose.msra.mxu0 %v590
        %600 = vmatmul.bf16.gmra.mxu0 %v587
        %v601 = vpop.f32.mrf.mxu0
        %v602 = vadd.f32 0.0, %v601
        %v603 = vpop.f32.mrf.mxu0
        %604 = vdwg.mxu0
        %v605 = vsel %vm271, %v579, -inf
        %606 = vmax.xlane.f32.xlu0 %v605
        %v607 = vpop.xlane.xlu0 %606
        %v608 = vsel %vm271, %v602, -inf
        %609 = vmax.xlane.f32.xlu0 %v608
        %v610 = vpop.xlane.xlu0 %609
        %v611 = vsub.f32 %v579, %v607
        %v612 = vsub.f32 %v602, %v610
        %v613 = vmul.f32 %v611, 1.442695
        %v614 = vpow.pop %v613
        %v615 = vmul.f32 %v612, 1.442695
        %v616 = vpow.pop %v615
        %v617 = vsel %vm271, %v614, 0.0
        %618 = vadd.xlane.f32.xlu0 %v617
        %v619 = vpop.xlane.xlu0 %618
        %v620 = vsel %vm271, %v616, 0.0
        %621 = vadd.xlane.f32.xlu0 %v620
        %v622 = vpop.xlane.xlu0 %621
        %v623 = vrcp.pop %v619
        %v624 = vmul.f32 %v619, %v623
        %v625 = vsub.f32 1.0, %v624
        %v626 = vmul.f32 %v623, %v625
        %v627 = vadd.f32 %v623, %v626
        %vm628 = vweird.f32 %v619
        %vm629 = vweird.f32 %v623
        %vm630 = vmor %vm628, %vm629
        %v631 = vsel %vm630, %v623, %v627
        %v632 = vand.u32 2147483647, %v619
        %vm633 = vcmp.eq.f32.partialorder %v632, 8.507059e+37
        %v634 = vand.u32 %v619, 2147483648
        %v635 = vor.u32 1.1754944e-38, %v634
        %v636 = vsel %vm633, %v635, %v631
        %v637 = vmul.f32 %v614, %v636
        %v638 = vrcp.pop %v622
        %v639 = vmul.f32 %v622, %v638
        %v640 = vsub.f32 1.0, %v639
        %v641 = vmul.f32 %v638, %v640
        %v642 = vadd.f32 %v638, %v641
        %vm643 = vweird.f32 %v622
        %vm644 = vweird.f32 %v638
        %vm645 = vmor %vm643, %vm644
        %v646 = vsel %vm645, %v638, %v642
        %v647 = vand.u32 2147483647, %v622
        %vm648 = vcmp.eq.f32.partialorder %v647, 8.507059e+37
        %v649 = vand.u32 %v622, 2147483648
        %v650 = vor.u32 1.1754944e-38, %v649
        %v651 = vsel %vm648, %v650, %v646
        %v652 = vmul.f32 %v616, %v651
        %v653 = vpack.c.bf16 %v637, %v637
        %v654 = vpack.c.bf16 %v652, %v652
        %655 = vrot.lane.b32.xlu0 %v268, 48
        %v656 = vpop.permute.xlu0 %655
        %v658 = vsel %vm271, %v653, 0
        %v661 = vsel %vm370, %v656, 0
        %663 = vmatpush.bf16.msra.mxu0 0
        %664 = vmatpush.bf16.msra.mxu0 0
        %665 = vmatpush.bf16.msra.mxu0 0
        %666 = vmatpush.bf16.msra.mxu0 0
        %667 = vmatpush.bf16.msra.mxu0 0
        %668 = vmatpush.bf16.msra.mxu0 0
        %669 = vmatpush.bf16.msra.mxu0 0
        %670 = vmatpush.bf16.msra.mxu0 %v661
        %671 = vmatmul.bf16.gmra.mxu0 %v658
        %v672 = vpop.f32.mrf.mxu0
        %v673 = vadd.f32 0.0, %v672
        %v674 = vpop.f32.mrf.mxu0
        %675 = vdwg.mxu0
        %676 = vrot.lane.b32.xlu0 %v293, 48
        %v677 = vpop.permute.xlu0 %676
        %v679 = vsel %vm271, %v654, 0
        %v682 = vsel %vm370, %v677, 0
        %684 = vmatpush.bf16.msra.mxu0 0
        %685 = vmatpush.bf16.msra.mxu0 0
        %686 = vmatpush.bf16.msra.mxu0 0
        %687 = vmatpush.bf16.msra.mxu0 0
        %688 = vmatpush.bf16.msra.mxu0 0
        %689 = vmatpush.bf16.msra.mxu0 0
        %690 = vmatpush.bf16.msra.mxu0 0
        %691 = vmatpush.bf16.msra.mxu0 %v682
        %692 = vmatmul.bf16.gmra.mxu0 %v679
        %v693 = vpop.f32.mrf.mxu0
        %v694 = vadd.f32 0.0, %v693
        %v695 = vpop.f32.mrf.mxu0
        %696 = vdwg.mxu0
        %699 = vrot.lane.b32.xlu0 %v673, 16
        %v700 = vpop.permute.xlu0 %699
        %701 = vrot.lane.b32.xlu0 %v694, 16
        %v702 = vpop.permute.xlu0 %701
        %vm705 = vcmask 195712
        %706 = vst.msk [vmem:[#allocation2] sm:$0xff] %vm705, %v700
        %707 = vst.msk [vmem:[#allocation2 + $0x8] sm:$0xff] %vm705, %v702
        %708 = vrot.lane.b32.xlu0 %v268, 104
        %v709 = vpop.permute.xlu0 %708
        %710 = vrot.lane.b32.xlu0 %v268, 72
        %v711 = vpop.permute.xlu0 %710
        %v713 = vsel %vm271, %v709, 0
        %v716 = vsel %vm271, %v711, 0
        %718 = vmatpush.bf16.xpose.msra.mxu0 0
        %719 = vmatpush.bf16.xpose.msra.mxu0 0
        %720 = vmatpush.bf16.xpose.msra.mxu0 0
        %721 = vmatpush.bf16.xpose.msra.mxu0 0
        %722 = vmatpush.bf16.xpose.msra.mxu0 0
        %723 = vmatpush.bf16.xpose.msra.mxu0 0
        %724 = vmatpush.bf16.xpose.msra.mxu0 0
        %725 = vmatpush.bf16.xpose.msra.mxu0 %v716
        %726 = vmatmul.bf16.gmra.mxu0 %v713
        %v727 = vpop.f32.mrf.mxu0
        %v728 = vadd.f32 0.0, %v727
        %v729 = vpop.f32.mrf.mxu0
        %730 = vdwg.mxu0
        %731 = vrot.lane.b32.xlu0 %v293, 104
        %v732 = vpop.permute.xlu0 %731
        %733 = vrot.lane.b32.xlu0 %v293, 72
        %v734 = vpop.permute.xlu0 %733
        %v736 = vsel %vm271, %v732, 0
        %v739 = vsel %vm271, %v734, 0
        %741 = vmatpush.bf16.xpose.msra.mxu0 0
        %742 = vmatpush.bf16.xpose.msra.mxu0 0
        %743 = vmatpush.bf16.xpose.msra.mxu0 0
        %744 = vmatpush.bf16.xpose.msra.mxu0 0
        %745 = vmatpush.bf16.xpose.msra.mxu0 0
        %746 = vmatpush.bf16.xpose.msra.mxu0 0
        %747 = vmatpush.bf16.xpose.msra.mxu0 0
        %748 = vmatpush.bf16.xpose.msra.mxu0 %v739
        %749 = vmatmul.bf16.gmra.mxu0 %v736
        %v750 = vpop.f32.mrf.mxu0
        %v751 = vadd.f32 0.0, %v750
        %v752 = vpop.f32.mrf.mxu0
        %753 = vdwg.mxu0
        %v754 = vsel %vm271, %v728, -inf
        %755 = vmax.xlane.f32.xlu0 %v754
        %v756 = vpop.xlane.xlu0 %755
        %v757 = vsel %vm271, %v751, -inf
        %758 = vmax.xlane.f32.xlu0 %v757
        %v759 = vpop.xlane.xlu0 %758
        %v760 = vsub.f32 %v728, %v756
        %v761 = vsub.f32 %v751, %v759
        %v762 = vmul.f32 %v760, 1.442695
        %v763 = vpow.pop %v762
        %v764 = vmul.f32 %v761, 1.442695
        %v765 = vpow.pop %v764
        %v766 = vsel %vm271, %v763, 0.0
        %767 = vadd.xlane.f32.xlu0 %v766
        %v768 = vpop.xlane.xlu0 %767
        %v769 = vsel %vm271, %v765, 0.0
        %770 = vadd.xlane.f32.xlu0 %v769
        %v771 = vpop.xlane.xlu0 %770
        %v772 = vrcp.pop %v768
        %v773 = vmul.f32 %v768, %v772
        %v774 = vsub.f32 1.0, %v773
        %v775 = vmul.f32 %v772, %v774
        %v776 = vadd.f32 %v772, %v775
        %vm777 = vweird.f32 %v768
        %vm778 = vweird.f32 %v772
        %vm779 = vmor %vm777, %vm778
        %v780 = vsel %vm779, %v772, %v776
        %v781 = vand.u32 2147483647, %v768
        %vm782 = vcmp.eq.f32.partialorder %v781, 8.507059e+37
        %v783 = vand.u32 %v768, 2147483648
        %v784 = vor.u32 1.1754944e-38, %v783
        %v785 = vsel %vm782, %v784, %v780
        %v786 = vmul.f32 %v763, %v785
        %v787 = vrcp.pop %v771
        %v788 = vmul.f32 %v771, %v787
        %v789 = vsub.f32 1.0, %v788
        %v790 = vmul.f32 %v787, %v789
        %v791 = vadd.f32 %v787, %v790
        %vm792 = vweird.f32 %v771
        %vm793 = vweird.f32 %v787
        %vm794 = vmor %vm792, %vm793
        %v795 = vsel %vm794, %v787, %v791
        %v796 = vand.u32 2147483647, %v771
        %vm797 = vcmp.eq.f32.partialorder %v796, 8.507059e+37
        %v798 = vand.u32 %v771, 2147483648
        %v799 = vor.u32 1.1754944e-38, %v798
        %v800 = vsel %vm797, %v799, %v795
        %v801 = vmul.f32 %v765, %v800
        %v802 = vpack.c.bf16 %v786, %v786
        %v803 = vpack.c.bf16 %v801, %v801
        %804 = vrot.lane.b32.xlu0 %v268, 40
        %v805 = vpop.permute.xlu0 %804
        %v807 = vsel %vm271, %v802, 0
        %v810 = vsel %vm370, %v805, 0
        %812 = vmatpush.bf16.msra.mxu0 0
        %813 = vmatpush.bf16.msra.mxu0 0
        %814 = vmatpush.bf16.msra.mxu0 0
        %815 = vmatpush.bf16.msra.mxu0 0
        %816 = vmatpush.bf16.msra.mxu0 0
        %817 = vmatpush.bf16.msra.mxu0 0
        %818 = vmatpush.bf16.msra.mxu0 0
        %819 = vmatpush.bf16.msra.mxu0 %v810
        %820 = vmatmul.bf16.gmra.mxu0 %v807
        %v821 = vpop.f32.mrf.mxu0
        %v822 = vadd.f32 0.0, %v821
        %v823 = vpop.f32.mrf.mxu0
        %824 = vdwg.mxu0
        %825 = vrot.lane.b32.xlu0 %v293, 40
        %v826 = vpop.permute.xlu0 %825
        %v828 = vsel %vm271, %v803, 0
        %v831 = vsel %vm370, %v826, 0
        %833 = vmatpush.bf16.msra.mxu0 0
        %834 = vmatpush.bf16.msra.mxu0 0
        %835 = vmatpush.bf16.msra.mxu0 0
        %836 = vmatpush.bf16.msra.mxu0 0
        %837 = vmatpush.bf16.msra.mxu0 0
        %838 = vmatpush.bf16.msra.mxu0 0
        %839 = vmatpush.bf16.msra.mxu0 0
        %840 = vmatpush.bf16.msra.mxu0 %v831
        %841 = vmatmul.bf16.gmra.mxu0 %v828
        %v842 = vpop.f32.mrf.mxu0
        %v843 = vadd.f32 0.0, %v842
        %v844 = vpop.f32.mrf.mxu0
        %845 = vdwg.mxu0
        %848 = vrot.lane.b32.xlu0 %v822, 24
        %v849 = vpop.permute.xlu0 %848
        %850 = vrot.lane.b32.xlu0 %v843, 24
        %v851 = vpop.permute.xlu0 %850
        %vm854 = vcmask 261312
        %855 = vst.msk [vmem:[#allocation2] sm:$0xff] %vm854, %v849
        %856 = vst.msk [vmem:[#allocation2 + $0x8] sm:$0xff] %vm854, %v851
        %v857 = vld [vmem:[#allocation2] sm:$0xff]
        %v858 = vld [vmem:[#allocation2 + $0x8] sm:$0xff]
        %v859 = vpack.c.bf16 %v858, %v857
        %v860 = vld [vmem:[#allocation8] sm:$0xf]
        %v861 = vld [vmem:[#allocation8 + $0x4] sm:$0xf]
        %v862 = vld [vmem:[#allocation8 + $0x8] sm:$0xf]
        %v863 = vld [vmem:[#allocation8 + $0xc] sm:$0xf]
        %v868 = vunpack.c.l.b16 %v860
        %v869 = vunpack.c.l.b16 %v861
        %v870 = vunpack.c.l.b16 %v862
        %v871 = vunpack.c.l.b16 %v863
        %v872 = vpack.c.b16 %v869, %v868
        %v873 = vpack.c.b16 %v871, %v870
        %v877 = vsel %vm246, %v859, 0
        %879 = vmatpush.bf16.msra.mxu0 0
        %880 = vmatpush.bf16.msra.mxu0 0
        %881 = vmatpush.bf16.msra.mxu0 0
        %882 = vmatpush.bf16.msra.mxu0 0
        %883 = vmatpush.bf16.msra.mxu0 0
        %884 = vmatpush.bf16.msra.mxu0 0
        %885 = vmatpush.bf16.msra.mxu0 %v873
        %886 = vmatpush.bf16.msra.mxu0 %v872
        %887 = vmatmul.bf16.gmra.mxu0 %v877
        %v888 = vpop.f32.mrf.mxu0
        %v889 = vadd.f32 0.0, %v888
        %v890 = vpop.f32.mrf.mxu0
        %v891 = vadd.f32 0.0, %v890
        %892 = vdwg.mxu0
        %893 = vst.msk [vmem:[%s223] sm:$0xff] %vm246, %v889
        %894 = vst.msk [vmem:[%s223 + $0x8] sm:$0xff] %vm246, %v891
        %s895 = sand.u32 %s97, 1
        %s896 = scalar_lea.sflag [#allocation5], %s895
        %s897 = sand.u32 %s97, 1
        %s898 = smul.addr %s897, 16
        %s899 = scalar_lea.vmem [#allocation9], %s898
        // Predicated region
        $region45: #{tpu_custom_call.1} parent=31 // pred_check
          %p900 = pneg %p107
        $region46: #{tpu_custom_call.1} parent=31 // pred_check_branch
          %902 = sbr.rel (%p900) target = $region48
        $region47: #{tpu_custom_call.1} parent=31 // pred_region
          %s903 = smul.u32 2, %s21
          %905 = vsyncadd %s896, 0
          %s906 = smul.addr %s903, 8
          %s907 = scalar_lea.hbm %s3, %s906
          %s908 = sshll.u32 %s899, 4
          %s909 = int_to_ptr.vmem [resolvable:$true] %s908
          %s910 = sshll.u32 %s907, 4
          %s911 = int_to_ptr.hbm [resolvable:$true] %s910
          %916 = dma.vmem_to_hbm [thread:$0]  %s909, 256, %s911, %s896, 128, 128, 8
        $region48: #{tpu_custom_call.1} parent=31 // pred_fallthru
          _
      $region32: #{tpu_custom_call.1} parent=5 // pred_fallthru
        _
      %p917 = scmp.le.s32.totalorder 2, %s16
      // Predicated region
      $region49: #{tpu_custom_call.1} parent=5 // pred_check
        %p918 = pneg %p917
      $region50: #{tpu_custom_call.1} parent=5 // pred_check_branch
        %920 = sbr.rel (%p918) target = $region52
      $region51: #{tpu_custom_call.1} parent=5 // pred_region
        %s921 = ssub.s32 %s16, 2
        // Predicated region
        $region53: #{tpu_custom_call.1} parent=51 // pred_check
          %p922 = pneg %p113
        $region54: #{tpu_custom_call.1} parent=51 // pred_check_branch
          %924 = sbr.rel (%p922) target = $region56
        $region55: #{tpu_custom_call.1} parent=51 // pred_region
          %s925 = sand.u32 %s98, 1
          %s926 = scalar_lea.sflag [#allocation5], %s925
          %s927 = sand.u32 %s98, 1
          %s928 = smul.addr %s927, 16
          %s929 = scalar_lea.vmem [#allocation9], %s928
          %931 = dma.done %s926, 256
        $region56: #{tpu_custom_call.1} parent=51 // pred_fallthru
          _
      $region52: #{tpu_custom_call.1} parent=5 // pred_fallthru
        _
    $region6: #{tpu_custom_call.1} parent=1 // loop_footer
      %s20 = sadd.s32 1, %s16
    $region7: #{tpu_custom_call.1} parent=1 // loop_footer_branch
      %15 = sbr.rel target = $region3
    $region8: #{tpu_custom_call.1} parent=1 // loop_exit
      _
    %932 = vsyncpa [#allocation4], 1
    %s933 = scalar_lea.sflag [#allocation4], 1
    %934 = vsyncpa %s933, 1
    %935 = vsyncpa [#allocation7], 1
    %936 = vsyncpa [#allocation5], 1
    %s937 = scalar_lea.sflag [#allocation5], 1
    %938 = vsyncpa %s937, 1

</llo_original>
